<compile_context>
chip_gen: v6e
topology: v6e:2x2x1
jax: 0.10.0
libtpu: 0.0.40
codegen_flags: <defaults>
</compile_context>

<pallas_src>
import functools

import jax
import jax.numpy as jnp
from jax import lax
from jax.experimental import pallas as pl
from jax.experimental.pallas import tpu as pltpu


def _round_up(x, m):
    return ((x + m - 1) // m) * m


def _cdiv(a, b):
    return (a + b - 1) // b


# --------------------------------------------------------------------------
# Fast path: H*W % 128 == 0.  View = [B, C*HW/128, 128]; channel 0 of batch b
# occupies rows [0, HW/128) of slab b.  Grid = (B, n_chunks).
# --------------------------------------------------------------------------
def _spm_loss_rows_kernel(x_ref, t_ref, out_ref, *, rows, R, n_chunks, tail_pad):
    """x_ref/t_ref: (1, R, 128) rows of one batch slab; out_ref: (1, 8, 128)."""
    i = pl.program_id(1)  # streaming / reduction step (arbitrary axis)

    @pl.when(i == 0)
    def _init():
        out_ref[...] = jnp.zeros_like(out_ref)

    x = x_ref[...].astype(jnp.float32)
    t = t_ref[...].astype(jnp.float32)
    # sigmoid(x) == 0.5*tanh(0.5*x) + 0.5  -- single EUP op instead of exp+recip
    pred = 0.5 * jnp.tanh(0.5 * x) + 0.5
    # Fused mask: sigmoid(x)*mask - t == where(t > 0, sigmoid(x) - t, -t)
    d = jnp.where(t > 0.0, pred - t, -t)

    def _accumulate(dd):
        dsq = dd * dd                                           # (1, R, 128)
        # Tile-aligned reshape (no relayout) + tree add down to one vreg.
        part = jnp.sum(dsq.reshape(R // 8, 8, 128), axis=0)      # (8, 128)
        out_ref[...] += part[None]

    if not tail_pad:
        _accumulate(d)
    else:
        # Only the last chunk can contain rows >= `rows` (other channels /
        # balancing padding); apply the row mask only there.
        is_tail = i == n_chunks - 1

        @pl.when(jnp.logical_not(is_tail))
        def _body():
            _accumulate(d)

        @pl.when(is_tail)
        def _tail():
            row = i * R + lax.broadcasted_iota(jnp.int32, d.shape, 1)
            _accumulate(jnp.where(row < rows, d, 0.0))


def _spm_loss_fast(x3, t3, *, B, rows, R, n_chunks, tail_pad, itemsize):
    tile_bytes = R * 128 * itemsize                      # already lane/sublane dense
    vmem_limit = int(min(max(4 * tile_bytes + (4 << 20), 16 << 20), 56 << 20))
    kernel = functools.partial(
        _spm_loss_rows_kernel, rows=rows, R=R, n_chunks=n_chunks, tail_pad=tail_pad)
    partials = pl.pallas_call(
        kernel,
        out_shape=jax.ShapeDtypeStruct((B, 8, 128), jnp.float32),
        grid=(B, n_chunks),
        in_specs=[
            pl.BlockSpec((1, R, 128), lambda b, i: (b, i, 0)),
            pl.BlockSpec((1, R, 128), lambda b, i: (b, i, 0)),
        ],
        out_specs=pl.BlockSpec((1, 8, 128), lambda b, i: (b, 0, 0)),
        compiler_params=pltpu.CompilerParams(
            dimension_semantics=("parallel", "arbitrary"),
            vmem_limit_bytes=vmem_limit,
        ),
        cost_estimate=pl.CostEstimate(
            flops=8 * B * n_chunks * R * 128,
            transcendentals=B * n_chunks * R * 128,
            bytes_accessed=2 * B * n_chunks * R * 128 * itemsize + B * 8 * 128 * 4,
        ),
    )(x3, t3)
    return jnp.sum(partials)


# --------------------------------------------------------------------------
# Fallback path: ragged H*W (not a multiple of 128) or degenerate tiny shapes.
# View = [B, C*HW]; channel 0 of batch b is columns [0, HW) of row b.
# --------------------------------------------------------------------------
def _spm_loss_flat_kernel(x_ref, t_ref, out_ref, *, hw, tl):
    i = pl.program_id(0)

    @pl.when(i == 0)
    def _init():
        out_ref[...] = jnp.zeros_like(out_ref)

    x = x_ref[...].astype(jnp.float32)          # (B, tl)
    t = t_ref[...].astype(jnp.float32)
    pred = 0.5 * jnp.tanh(0.5 * x) + 0.5
    d = jnp.where(t > 0.0, pred - t, -t)
    # Columns at/after H*W belong to other channels; zero them.
    col = i * tl + lax.broadcasted_iota(jnp.int32, d.shape, 1)
    d = jnp.where(col < hw, d, 0.0)
    # Splat-accumulate the per-step sum; wrapper reads element [0,0,0].
    out_ref[...] += jnp.full(out_ref.shape, jnp.sum(d * d), jnp.float32)


def _spm_loss_slow(x2, t2, *, B, HW, tl, n_tiles, itemsize):
    padded_tile = _round_up(B, 8) * _round_up(tl, 128) * itemsize
    vmem_limit = int(min(max(4 * padded_tile + (4 << 20), 16 << 20), 56 << 20))
    kernel = functools.partial(_spm_loss_flat_kernel, hw=HW, tl=tl)
    partial = pl.pallas_call(
        kernel,
        out_shape=jax.ShapeDtypeStruct((1, 8, 128), jnp.float32),
        grid=(n_tiles,),
        in_specs=[
            pl.BlockSpec((B, tl), lambda i: (0, i)),
            pl.BlockSpec((B, tl), lambda i: (0, i)),
        ],
        out_specs=pl.BlockSpec((1, 8, 128), lambda i: (0, 0, 0)),
        compiler_params=pltpu.CompilerParams(
            dimension_semantics=("arbitrary",),
            vmem_limit_bytes=vmem_limit,
        ),
    )(x2, t2)
    return partial[0, 0, 0]


def spm_loss(inp, target, *, max_tile_bytes=4 << 20):
    """inp, target: [B, 1 + 2K, H, W] (NCHW, same as the PyTorch module)."""
    assert inp.shape == target.shape
    B, C, H, W = inp.shape
    HW = H * W
    Lc = C * HW
    itemsize = max(inp.dtype.itemsize, target.dtype.itemsize)

    total = None
    if HW % 128 == 0:
        rows = HW // 128                       # channel-0 rows per batch slab
        tot_rows = C * rows                    # full per-batch slab extent
        row_cap = max(8, ((max_tile_bytes // (128 * itemsize)) // 8) * 8)
        n_chunks = _cdiv(rows, row_cap)
        # Balance chunks so tail waste is < 8 rows per batch.
        R = min(row_cap, _round_up(_cdiv(rows, n_chunks), 8))
        if n_chunks * R <= tot_rows:           # block windows stay in-bounds
            tail_pad = n_chunks * R != rows
            # Contiguity-preserving reshape: channel 0 of batch b occupies the
            # first `rows` rows of slab b.  Lane- and sublane-dense tiles.
            x3 = inp.reshape(B, tot_rows, 128)
            t3 = target.reshape(B, tot_rows, 128)
            total = _spm_loss_fast(
                x3, t3, B=B, rows=rows, R=R, n_chunks=n_chunks,
                tail_pad=tail_pad, itemsize=itemsize)

    if total is None:
        # Ragged H*W (or degenerate tiny slabs): stream (B, tl) tiles of the
        # flat per-batch rows.  Budget accounts for sublane padding (B -> 8).
        tl_cap = max(128, ((max_tile_bytes // (8 * itemsize)) // 128) * 128)
        tl = min(tl_cap, _round_up(HW, 128))
        n_tiles = _cdiv(HW, tl)
        if n_tiles * tl > Lc:                  # would spill past the row: take it whole
            tl, n_tiles = Lc, 1
        x2 = inp.reshape(B, Lc)
        t2 = target.reshape(B, Lc)
        total = _spm_loss_slow(x2, t2, B=B, HW=HW, tl=tl,
                               n_tiles=n_tiles, itemsize=itemsize)

    # mean((pred*mask - t)^2) * B  ==  sum(diff^2) / (H*W), with the global H*W.
    return total / jnp.float32(HW)


def _spm_loss_ref(inp, target):
    """Pure-JAX reference mirroring the PyTorch forward."""
    pred = jnp.transpose(inp, (0, 2, 3, 1))
    pred_root = jax.nn.sigmoid(pred[..., 0])
    true_root = target[:, 0, :, :]
    mask = jnp.where(true_root > 0.0, 1.0, 0.0).astype(jnp.float32)
    loss_root = jnp.mean((pred_root * mask - true_root) ** 2)
    return loss_root * inp.shape[0]


if __name__ == "__main__":
    def make_inputs(key, B, K, H, W):
        C = 1 + 2 * K
        k1, k2, k3 = jax.random.split(key, 3)
        x = jax.random.normal(k1, (B, C, H, W), dtype=jnp.float32)
        heat = jax.random.uniform(k2, (B, 1, H, W), dtype=jnp.float32)
        heat = jnp.where(heat > 0.7, heat, 0.0)   # sparse non-negative roots
        disp = jax.random.normal(k3, (B, 2 * K, H, W), dtype=jnp.float32)
        return x, jnp.concatenate([heat, disp], axis=1)

    key = jax.random.PRNGKey(0)
    configs = [
        # (B, K, H, W, max_tile_bytes)
        (2, 8, 16, 16, 4 << 20),   # fast path: single chunk, masked padding rows
        (2, 8, 64, 64, 4096),      # fast path: 4-chunk streaming, exact (no mask)
        (2, 2, 48, 32, 4096),      # fast path: 2 chunks, masked tail chunk
        (2, 4, 24, 24, 4 << 20),   # H*W not a multiple of 128 -> flat fallback
    ]
    for idx, (B, K, H, W, mtb) in enumerate(configs):
        key, sub = jax.random.split(key)
        x, tgt = make_inputs(sub, B, K, H, W)
        got = jax.block_until_ready(spm_loss(x, tgt, max_tile_bytes=mtb))
        ref = _spm_loss_ref(x, tgt)
        assert jnp.allclose(got, ref, rtol=1e-5, atol=1e-5), (idx, float(got), float(ref))
    print("KERNEL_OK")
</pallas_src>

<mosaic_0001>
module attributes {stable_mosaic.version = 11 : i64} {
  func.func @_spm_loss_rows_kernel(%arg0: i32, %arg1: i32, %arg2: memref<1x8x128xf32, #tpu.memory_space<vmem>>, %arg3: memref<1x8x128xf32, #tpu.memory_space<vmem>>, %arg4: memref<1x8x128xf32, #tpu.memory_space<vmem>>) attributes {dimension_semantics = [#tpu.dimension_semantics<parallel>, #tpu.dimension_semantics<arbitrary>], iteration_bounds = array<i64: 2, 1>, scalar_prefetch = 0 : i64, scratch_operands = 0 : i64, tpu.core_type = #tpu.core_type<tc>, window_params = [{transform_indices = @transform_0, window_bounds = array<i64: 1, 8, 128>}, {transform_indices = @transform_1, window_bounds = array<i64: 1, 8, 128>}, {transform_indices = @transform_2, window_bounds = array<i64: 1, 8, 128>}]} {
    %c0_i32 = arith.constant 0 : i32
    %0 = arith.cmpi eq, %arg1, %c0_i32 : i32
    %1 = arith.extui %0 : i1 to i32
    %c0_i32_0 = arith.constant 0 : i32
    %2 = arith.cmpi ne, %1, %c0_i32_0 : i32
    scf.if %2 {
      %cst_13 = arith.constant 0.000000e+00 : f32
      %24 = vector.broadcast %cst_13 : f32 to vector<1x8x128xf32>
      %c0_14 = arith.constant 0 : index
      %c0_15 = arith.constant 0 : index
      %c0_16 = arith.constant 0 : index
      %25 = vector.load %arg4[%c0_14, %c0_15, %c0_16] : memref<1x8x128xf32, #tpu.memory_space<vmem>>, vector<1x8x128xf32>
      tpu.vector_store %arg4[%c0_14, %c0_15, %c0_16], %24 {strides = array<i32>} : memref<1x8x128xf32, #tpu.memory_space<vmem>>, vector<1x8x128xf32>,
    } else {
    }
    %c0 = arith.constant 0 : index
    %c0_1 = arith.constant 0 : index
    %c0_2 = arith.constant 0 : index
    %3 = vector.load %arg2[%c0, %c0_1, %c0_2] : memref<1x8x128xf32, #tpu.memory_space<vmem>>, vector<1x8x128xf32>
    %c0_3 = arith.constant 0 : index
    %c0_4 = arith.constant 0 : index
    %c0_5 = arith.constant 0 : index
    %4 = vector.load %arg3[%c0_3, %c0_4, %c0_5] : memref<1x8x128xf32, #tpu.memory_space<vmem>>, vector<1x8x128xf32>
    %cst = arith.constant 5.000000e-01 : f32
    %5 = vector.broadcast %cst : f32 to vector<1x8x128xf32>
    %6 = arith.mulf %5, %3 : vector<1x8x128xf32>
    %7 = math.tanh %6 : vector<1x8x128xf32>
    %cst_6 = arith.constant 5.000000e-01 : f32
    %8 = vector.broadcast %cst_6 : f32 to vector<1x8x128xf32>
    %9 = arith.mulf %8, %7 : vector<1x8x128xf32>
    %cst_7 = arith.constant 5.000000e-01 : f32
    %10 = vector.broadcast %cst_7 : f32 to vector<1x8x128xf32>
    %11 = arith.addf %9, %10 : vector<1x8x128xf32>
    %cst_8 = arith.constant 0.000000e+00 : f32
    %12 = vector.broadcast %cst_8 : f32 to vector<1x8x128xf32>
    %13 = arith.cmpf ogt, %4, %12 : vector<1x8x128xf32>
    %14 = arith.subf %11, %4 : vector<1x8x128xf32>
    %cst_9 = arith.constant 0.000000e+00 : f32
    %15 = vector.broadcast %cst_9 : f32 to vector<1x8x128xf32>
    %16 = arith.subf %15, %4 : vector<1x8x128xf32>
    %17 = arith.select %13, %14, %16 : vector<1x8x128xi1>, vector<1x8x128xf32>
    %c0_i32_10 = arith.constant 0 : i32
    %18 = arith.cmpi eq, %arg1, %c0_i32_10 : i32
    %true = arith.constant true
    %19 = arith.xori %18, %true : i1
    %20 = arith.extui %19 : i1 to i32
    %c0_i32_11 = arith.constant 0 : i32
    %21 = arith.cmpi ne, %20, %c0_i32_11 : i32
    scf.if %21 {
      %24 = arith.mulf %17, %17 : vector<1x8x128xf32>
      %cst_13 = arith.constant dense<0.000000e+00> : vector<8x128xf32>
      %25 = vector.multi_reduction <add>, %24, %cst_13 [0] : vector<1x8x128xf32> to vector<8x128xf32>
      %c0_14 = arith.constant 0 : index
      %c0_15 = arith.constant 0 : index
      %c0_16 = arith.constant 0 : index
      %26 = vector.load %arg4[%c0_14, %c0_15, %c0_16] : memref<1x8x128xf32, #tpu.memory_space<vmem>>, vector<1x8x128xf32>
      %27 = vector.shape_cast %25 : vector<8x128xf32> to vector<1x8x128xf32>
      %28 = arith.addf %26, %27 : vector<1x8x128xf32>
      %c0_17 = arith.constant 0 : index
      %c0_18 = arith.constant 0 : index
      %c0_19 = arith.constant 0 : index
      %29 = vector.load %arg4[%c0_17, %c0_18, %c0_19] : memref<1x8x128xf32, #tpu.memory_space<vmem>>, vector<1x8x128xf32>
      tpu.vector_store %arg4[%c0_17, %c0_18, %c0_19], %28 {strides = array<i32>} : memref<1x8x128xf32, #tpu.memory_space<vmem>>, vector<1x8x128xf32>,
    } else {
    }
    %22 = arith.extui %18 : i1 to i32
    %c0_i32_12 = arith.constant 0 : i32
    %23 = arith.cmpi ne, %22, %c0_i32_12 : i32
    scf.if %23 {
      %c8_i32 = arith.constant 8 : i32
      %24 = arith.muli %arg1, %c8_i32 : i32
      %25 = tpu.iota {dimensions = array<i32: 1>} : vector<1x8x128xi32>
      %26 = vector.broadcast %24 : i32 to vector<1x8x128xi32>
      %27 = arith.addi %26, %25 : vector<1x8x128xi32>
      %c2_i32 = arith.constant 2 : i32
      %28 = vector.broadcast %c2_i32 : i32 to vector<1x8x128xi32>
      %29 = arith.cmpi slt, %27, %28 : vector<1x8x128xi32>
      %cst_13 = arith.constant 0.000000e+00 : f32
      %30 = vector.broadcast %cst_13 : f32 to vector<1x8x128xf32>
      %31 = arith.select %29, %17, %30 : vector<1x8x128xi1>, vector<1x8x128xf32>
      %32 = arith.mulf %31, %31 : vector<1x8x128xf32>
      %cst_14 = arith.constant dense<0.000000e+00> : vector<8x128xf32>
      %33 = vector.multi_reduction <add>, %32, %cst_14 [0] : vector<1x8x128xf32> to vector<8x128xf32>
      %c0_15 = arith.constant 0 : index
      %c0_16 = arith.constant 0 : index
      %c0_17 = arith.constant 0 : index
      %34 = vector.load %arg4[%c0_15, %c0_16, %c0_17] : memref<1x8x128xf32, #tpu.memory_space<vmem>>, vector<1x8x128xf32>
      %35 = vector.shape_cast %33 : vector<8x128xf32> to vector<1x8x128xf32>
      %36 = arith.addf %34, %35 : vector<1x8x128xf32>
      %c0_18 = arith.constant 0 : index
      %c0_19 = arith.constant 0 : index
      %c0_20 = arith.constant 0 : index
      %37 = vector.load %arg4[%c0_18, %c0_19, %c0_20] : memref<1x8x128xf32, #tpu.memory_space<vmem>>, vector<1x8x128xf32>
      tpu.vector_store %arg4[%c0_18, %c0_19, %c0_20], %36 {strides = array<i32>} : memref<1x8x128xf32, #tpu.memory_space<vmem>>, vector<1x8x128xf32>,
    } else {
    }
    return
  }
  func.func @transform_0(%arg0: i32, %arg1: i32) -> (i32, i32, i32) {
    %c0_i32 = arith.constant 0 : i32
    %c0_i32_0 = arith.constant 0 : i32
    return %arg0, %arg1, %c0_i32 : i32, i32, i32
  }
  func.func @transform_1(%arg0: i32, %arg1: i32) -> (i32, i32, i32) {
    %c0_i32 = arith.constant 0 : i32
    %c0_i32_0 = arith.constant 0 : i32
    return %arg0, %arg1, %c0_i32 : i32, i32, i32
  }
  func.func @transform_2(%arg0: i32, %arg1: i32) -> (i32, i32, i32) {
    %c0_i32 = arith.constant 0 : i32
    %c0_i32_0 = arith.constant 0 : i32
    %c0_i32_1 = arith.constant 0 : i32
    return %arg0, %c0_i32, %c0_i32_0 : i32, i32, i32
  }
}

</mosaic_0001>

<llo_original>
// kernel: tpu_custom_call.1
$region0: #{tpu_custom_call.1}
  #allocation0 [shape = 'u32[]', space=smem, size = 0x4, offset = 0x4, fixed_abs, tag = 'smem constant byte address 0x4 - core index']
  #allocation1 [shape = 'u32[144,128]{1,0:T(1,128)}', space=vmem, size = 0x12000, scoped, tag = 'internal scratch']
  %s0 = inlined_call_operand.vmem [shape: f32[2,34,128], index: 0, kind: input, shape index: {}]
  %s1 = inlined_call_operand.vmem [shape: f32[2,34,128], index: 1, kind: input, shape index: {}]
  %s2 = inlined_call_operand.hbm [shape: f32[2,8,128], index: 2, kind: output, shape index: {}]
  %s3 = sld [smem:[#allocation0]]
  $region53: #{tpu_custom_call.1} parent=0
    _
  %s5 = ssub.s32 1, %s3
  %s6 = scalar_select 0, %s5, %s3
  $region1: #{tpu_custom_call.1} parent=0
    #allocation2 [shape = 'u8[8192]{0}', space=vmem, size = 0x2000, scoped, tag = 'output window, operand 0']
    #allocation3 [shape = 's32[2]{0}', space=sflag, size = 0x8, scoped, tag = 'scoped memory for tpu_custom_call.1']
    %7 = vsyncpa [#allocation3], 0
    %s8 = scalar_lea.sflag [#allocation3], 1
    %9 = vsyncpa %s8, 0
    loop: start=0, step=1, limit=4
    $region2: #{tpu_custom_call.1} parent=1 // loop_pre_header
      _
    $region3: #{tpu_custom_call.1} parent=1 // loop_header
      %s11 = sphi 0, %s15
      %p12 = scmp.ge.s32.totalorder %s11, 4
      %s18 = sphi 0, %s30
      %s19 = sphi 0, %s26
      %s20 = sphi 0, %s18
      %s21 = sphi 0, %s19
      %s22 = sphi 0, %s20
      %s23 = sphi 0, %s21
      %s35 = sphi 0, %s37
      %s38 = sphi 0, %s35
      %s39 = sphi 0, %s38
      %s55 = sphi 0, %s39
      %s63 = sphi 0, %s65
      %s66 = sphi 0, %s63
      %s67 = sphi 0, %s66
      %s83 = sphi 0, %s67
      %s89 = sphi 0, %s91
      %s92 = sphi 0, %s89
      %s93 = sphi 0, %s92
      %s109 = sphi 0, %s93
    $region4: #{tpu_custom_call.1} parent=1 // loop_header_branch
      %14 = sbr.rel (%p12) target = $region8
    $region5: #{tpu_custom_call.1} parent=1 // loop_body
      %s16 = ssub.s32 %s11, 1
      %s17 = ssub.s32 %s11, 2
      %s24 = sadd.s32 1, %s19
      %p25 = scmp.ge.s32.totalorder %s24, 1
      %s26 = scalar_select %p25, 0, %s24
      %s27 = sadd.s32 1, %s18
      %s28 = scalar_select %p25, %s27, %s18
      %p29 = scmp.ge.s32.totalorder %s28, 2
      %s30 = scalar_select %p29, 0, %s28
      %s31 = ssub.s32 %s18, %s30
      %s32 = ssub.s32 %s19, %s26
      %s33 = sor.u32 %s31, %s32
      %p34 = scmp.eq.s32.totalorder %s33, 0
      %s36 = sadd.s32 %s35, 1
      %s37 = scalar_select %p34, %s35, %s36
      %p40 = pneg %p34
      %p41 = scmp.eq.s32.totalorder %s11, 1
      %p42 = por %p40, %p41
      %p43 = scmp.ne.s32.totalorder %s35, %s38
      %p44 = scmp.eq.s32.totalorder %s11, 0
      %p45 = por %p43, %p44
      %p46 = scmp.ne.s32.totalorder %s35, %s38
      %p47 = scmp.eq.s32.totalorder %s16, 1
      %p48 = por %p46, %p47
      %p49 = scmp.ne.s32.totalorder %s38, %s39
      %p50 = scmp.eq.s32.totalorder %s16, 0
      %p51 = por %p49, %p50
      %p52 = scmp.ne.s32.totalorder %s38, %s39
      %p53 = scmp.eq.s32.totalorder %s17, 1
      %p54 = por %p52, %p53
      %p56 = scmp.ne.s32.totalorder %s39, %s55
      %p57 = scmp.eq.s32.totalorder %s17, 0
      %p58 = por %p56, %p57
      %s59 = ssub.s32 %s18, %s30
      %s60 = ssub.s32 %s19, %s26
      %s61 = sor.u32 %s59, %s60
      %p62 = scmp.eq.s32.totalorder %s61, 0
      %s64 = sadd.s32 %s63, 1
      %s65 = scalar_select %p62, %s63, %s64
      %p68 = pneg %p62
      %p69 = scmp.eq.s32.totalorder %s11, 1
      %p70 = por %p68, %p69
      %p71 = scmp.ne.s32.totalorder %s63, %s66
      %p72 = scmp.eq.s32.totalorder %s11, 0
      %p73 = por %p71, %p72
      %p74 = scmp.ne.s32.totalorder %s63, %s66
      %p75 = scmp.eq.s32.totalorder %s16, 1
      %p76 = por %p74, %p75
      %p77 = scmp.ne.s32.totalorder %s66, %s67
      %p78 = scmp.eq.s32.totalorder %s16, 0
      %p79 = por %p77, %p78
      %p80 = scmp.ne.s32.totalorder %s66, %s67
      %p81 = scmp.eq.s32.totalorder %s17, 1
      %p82 = por %p80, %p81
      %p84 = scmp.ne.s32.totalorder %s67, %s83
      %p85 = scmp.eq.s32.totalorder %s17, 0
      %p86 = por %p84, %p85
      %s87 = ssub.s32 %s18, %s30
      %p88 = scmp.eq.s32.totalorder %s87, 0
      %s90 = sadd.s32 %s89, 1
      %s91 = scalar_select %p88, %s89, %s90
      %p94 = pneg %p88
      %p95 = scmp.eq.s32.totalorder %s11, 1
      %p96 = por %p94, %p95
      %p97 = scmp.ne.s32.totalorder %s89, %s92
      %p98 = scmp.eq.s32.totalorder %s11, 0
      %p99 = por %p97, %p98
      %p100 = scmp.ne.s32.totalorder %s89, %s92
      %p101 = scmp.eq.s32.totalorder %s16, 1
      %p102 = por %p100, %p101
      %p103 = scmp.ne.s32.totalorder %s92, %s93
      %p104 = scmp.eq.s32.totalorder %s16, 0
      %p105 = por %p103, %p104
      %p106 = scmp.ne.s32.totalorder %s92, %s93
      %p107 = scmp.eq.s32.totalorder %s17, 1
      %p108 = por %p106, %p107
      %p110 = scmp.ne.s32.totalorder %s93, %s109
      %p111 = scmp.eq.s32.totalorder %s17, 0
      %p112 = por %p110, %p111
      %p113 = scmp.le.s32.totalorder 1, %s11
      %p114 = scmp.lt.s32.totalorder %s11, 3
      %p115 = pnand %p113, %p114
      %p116 = pneg %p115
      // Predicated region
      $region9: #{tpu_custom_call.1} parent=5 // pred_check
        _
      $region10: #{tpu_custom_call.1} parent=5 // pred_check_branch
        %118 = sbr.rel (%p115) target = $region12
      $region11: #{tpu_custom_call.1} parent=5 // pred_region
        %s119 = ssub.s32 %s11, 1
      $region12: #{tpu_custom_call.1} parent=5 // pred_fallthru
        _
      %p120 = scmp.lt.s32.totalorder %s11, 2
      // Predicated region
      $region13: #{tpu_custom_call.1} parent=5 // pred_check
        %p121 = pneg %p120
      $region14: #{tpu_custom_call.1} parent=5 // pred_check_branch
        %123 = sbr.rel (%p121) target = $region16
      $region15: #{tpu_custom_call.1} parent=5 // pred_region
        // Predicated region
        $region17: #{tpu_custom_call.1} parent=15 // pred_check
          %p124 = pneg %p45
        $region18: #{tpu_custom_call.1} parent=15 // pred_check_branch
          %126 = sbr.rel (%p124) target = $region20
        $region19: #{tpu_custom_call.1} parent=15 // pred_region
          %p127 = scmp.lt.s32.totalorder %s18, 1
          %s128 = scalar_select %p127, %s18, 1
          %p129 = scmp.lt.s32.totalorder %s19, 4
          %s130 = scalar_select %p129, %s19, 4
          %s131 = smul.addr %s128, 5
          %s132 = sadd.s32 %s130, %s131
          %s133 = smul.addr %s132, 8
          %s134 = scalar_lea.vmem %s0, %s133
        $region20: #{tpu_custom_call.1} parent=15 // pred_fallthru
          _
        // Predicated region
        $region21: #{tpu_custom_call.1} parent=15 // pred_check
          %p135 = pneg %p73
        $region22: #{tpu_custom_call.1} parent=15 // pred_check_branch
          %137 = sbr.rel (%p135) target = $region24
        $region23: #{tpu_custom_call.1} parent=15 // pred_region
          %p138 = scmp.lt.s32.totalorder %s18, 1
          %s139 = scalar_select %p138, %s18, 1
          %p140 = scmp.lt.s32.totalorder %s19, 4
          %s141 = scalar_select %p140, %s19, 4
          %s142 = smul.addr %s139, 5
          %s143 = sadd.s32 %s141, %s142
          %s144 = smul.addr %s143, 8
          %s145 = scalar_lea.vmem %s1, %s144
        $region24: #{tpu_custom_call.1} parent=15 // pred_fallthru
          _
      $region16: #{tpu_custom_call.1} parent=5 // pred_fallthru
        _
      %p146 = scmp.le.s32.totalorder 1, %s11
      %p147 = scmp.lt.s32.totalorder %s11, 3
      %p148 = pnand %p146, %p147
      %p149 = pneg %p148
      // Predicated region
      $region25: #{tpu_custom_call.1} parent=5 // pred_check
        _
      $region26: #{tpu_custom_call.1} parent=5 // pred_check_branch
        %151 = sbr.rel (%p148) target = $region28
      $region27: #{tpu_custom_call.1} parent=5 // pred_region
        %s152 = ssub.s32 %s11, 1
        %p153 = scmp.lt.s32.totalorder %s20, 1
        %s154 = scalar_select %p153, %s20, 1
        %p155 = scmp.lt.s32.totalorder %s21, 4
        %s156 = scalar_select %p155, %s21, 4
        %s157 = smul.addr %s154, 5
        %s158 = sadd.s32 %s156, %s157
        %s159 = smul.addr %s158, 8
        %s160 = scalar_lea.vmem %s0, %s159
        %p161 = pneg %p51
        %p162 = pneg %p48
        %p163 = scmp.lt.s32.totalorder %s20, 1
        %s164 = scalar_select %p163, %s20, 1
        %p165 = scmp.lt.s32.totalorder %s21, 4
        %s166 = scalar_select %p165, %s21, 4
        %s167 = smul.addr %s164, 5
        %s168 = sadd.s32 %s166, %s167
        %s169 = smul.addr %s168, 8
        %s170 = scalar_lea.vmem %s1, %s169
        %p171 = pneg %p79
        %p172 = pneg %p76
        %p173 = pneg %p105
        %p174 = pneg %p102
        %s175 = sand.u32 %s92, 1
        %s176 = scalar_lea.sflag [#allocation3], %s175
        %s177 = sand.u32 %s92, 1
        %s178 = smul.addr %s177, 8
        %s179 = scalar_lea.vmem [#allocation2], %s178
        %p180 = scmp.lt.s32.totalorder %s20, 1
        %s181 = scalar_select %p180, %s20, 1
        %p182 = scmp.lt.s32.totalorder %s21, 4
        %s183 = scalar_select %p182, %s21, 4
        %s184 = smul.addr %s181, 5
        %s185 = sadd.s32 %s183, %s184
        %s186 = smul.addr %s185, 8
        %s187 = scalar_lea.vmem %s0, %s186
        %p188 = scmp.lt.s32.totalorder %s20, 1
        %s189 = scalar_select %p188, %s20, 1
        %p190 = scmp.lt.s32.totalorder %s21, 4
        %s191 = scalar_select %p190, %s21, 4
        %s192 = smul.addr %s189, 5
        %s193 = sadd.s32 %s191, %s192
        %s194 = smul.addr %s193, 8
        %s195 = scalar_lea.vmem %s1, %s194
        %p196 = scmp.eq.s32.totalorder %s21, 0
        // Predicated region
        $region29: #{tpu_custom_call.1} parent=27 // pred_check
          %p197 = pneg %p196
        $region30: #{tpu_custom_call.1} parent=27 // pred_check_branch
          %199 = sbr.rel (%p197) target = $region32
        $region31: #{tpu_custom_call.1} parent=27 // pred_region
          %200 = vst [vmem:[%s179] sm:$0xff] 0.0
        $region32: #{tpu_custom_call.1} parent=27 // pred_fallthru
          _
        %v201 = vld [vmem:[%s187] sm:$0xff]
        %v202 = vld [vmem:[%s195] sm:$0xff]
        %v203 = vmul.f32 %v201, 0.5
        %v204 = vtanh.pop %v203
        %v205 = vmul.f32 %v204, 0.5
        %v206 = vadd.f32 %v205, 0.5
        %vm207 = vcmp.gt.f32.partialorder %v202, 0.0
        %v208 = vsub.f32 %v206, %v202
        %v209 = vsub.f32 0.0, %v202
        %v210 = vsel %vm207, %v208, %v209
        %p211 = scmp.ne.s32.totalorder %s21, 0
        // Predicated region
        $region33: #{tpu_custom_call.1} parent=27 // pred_check
          %p212 = pneg %p211
        $region34: #{tpu_custom_call.1} parent=27 // pred_check_branch
          %214 = sbr.rel (%p212) target = $region36
        $region35: #{tpu_custom_call.1} parent=27 // pred_region
          %v215 = vmul.f32 %v210, %v210
          %v216 = vadd.f32 %v215, 0.0
          %v217 = vld [vmem:[%s179] sm:$0xff]
          %v218 = vadd.f32 %v217, %v216
          %219 = vst [vmem:[%s179] sm:$0xff] %v218
        $region36: #{tpu_custom_call.1} parent=27 // pred_fallthru
          _
        // Predicated region
        $region37: #{tpu_custom_call.1} parent=27 // pred_check
          %p220 = pneg %p196
        $region38: #{tpu_custom_call.1} parent=27 // pred_check_branch
          %222 = sbr.rel (%p220) target = $region40
        $region39: #{tpu_custom_call.1} parent=27 // pred_region
          %s223 = smul.u32 %s21, 8
          %v224 = vlaneseq
          %v225 = vshrl.u32 %v224, 7
          %v226 = vstv %s223
          %v227 = vadd.s32 %v226, %v225
          %vm228 = vcmp.lt.s32.totalorder %v227, 2
          %v229 = vsel %vm228, %v210, 0.0
          %v230 = vmul.f32 %v229, %v229
          %v231 = vadd.f32 %v230, 0.0
          %v232 = vld [vmem:[%s179] sm:$0xff]
          %v233 = vadd.f32 %v232, %v231
          %234 = vst [vmem:[%s179] sm:$0xff] %v233
        $region40: #{tpu_custom_call.1} parent=27 // pred_fallthru
          _
        %s235 = sand.u32 %s92, 1
        %s236 = scalar_lea.sflag [#allocation3], %s235
        %s237 = sand.u32 %s92, 1
        %s238 = smul.addr %s237, 8
        %s239 = scalar_lea.vmem [#allocation2], %s238
        // Predicated region
        $region41: #{tpu_custom_call.1} parent=27 // pred_check
          %p240 = pneg %p102
        $region42: #{tpu_custom_call.1} parent=27 // pred_check_branch
          %242 = sbr.rel (%p240) target = $region44
        $region43: #{tpu_custom_call.1} parent=27 // pred_region
          %s244 = ssub.s32 128, 128
          %245 = vsyncadd %s236, %s244
          %s246 = smul.addr %s20, 128
          %s247 = scalar_lea.hbm %s2, %s246
          %s249 = sshll.u32 %s239, 4
          %s250 = int_to_ptr.vmem [resolvable:$true] %s249
          %252 = dma.vmem_to_hbm [thread:$0]  %s250, 128, %s247, %s236
        $region44: #{tpu_custom_call.1} parent=27 // pred_fallthru
          _
      $region28: #{tpu_custom_call.1} parent=5 // pred_fallthru
        _
      %p253 = scmp.le.s32.totalorder 2, %s11
      // Predicated region
      $region45: #{tpu_custom_call.1} parent=5 // pred_check
        %p254 = pneg %p253
      $region46: #{tpu_custom_call.1} parent=5 // pred_check_branch
        %256 = sbr.rel (%p254) target = $region48
      $region47: #{tpu_custom_call.1} parent=5 // pred_region
        %s257 = ssub.s32 %s11, 2
        // Predicated region
        $region49: #{tpu_custom_call.1} parent=47 // pred_check
          %p258 = pneg %p108
        $region50: #{tpu_custom_call.1} parent=47 // pred_check_branch
          %260 = sbr.rel (%p258) target = $region52
        $region51: #{tpu_custom_call.1} parent=47 // pred_region
          %s261 = sand.u32 %s93, 1
          %s262 = scalar_lea.sflag [#allocation3], %s261
          %s263 = sand.u32 %s93, 1
          %s264 = smul.addr %s263, 8
          %s265 = scalar_lea.vmem [#allocation2], %s264
          %266 = dma.done %s262, 128
        $region52: #{tpu_custom_call.1} parent=47 // pred_fallthru
          _
      $region48: #{tpu_custom_call.1} parent=5 // pred_fallthru
        _
    $region6: #{tpu_custom_call.1} parent=1 // loop_footer
      %s15 = sadd.s32 1, %s11
    $region7: #{tpu_custom_call.1} parent=1 // loop_footer_branch
      %10 = sbr.rel target = $region3
    $region8: #{tpu_custom_call.1} parent=1 // loop_exit
      _
    %267 = vsyncpa [#allocation3], 1
    %s268 = scalar_lea.sflag [#allocation3], 1
    %269 = vsyncpa %s268, 1

</llo_original>
